<compile_context>
chip_gen: v7x
topology: tpu7x:2x2x1
jax: 0.10.0
libtpu: 0.0.40
codegen_flags: <defaults>
</compile_context>

<pallas_src>
import functools
import math

import jax
import jax.numpy as jnp
from jax.experimental import pallas as pl
from jax.experimental.pallas import tpu as pltpu


# ------------------------------- Pallas kernel --------------------------------
def _feature_dropout_kernel(mask_ref, x_ref, out_ref):
    # Steady-state body: one tile load, one broadcasted vmul, one lane-dense store.
    x = x_ref[...].astype(jnp.float32)
    out_ref[...] = (x * mask_ref[...]).astype(out_ref.dtype)


def _lane_dense_width(f: int) -> int:
    """Smallest multiple of 128 that is also a multiple of F (lcm(F, 128))."""
    return f if f % 128 == 0 else (f * 128) // math.gcd(f, 128)


def _round_up(n: int, m: int) -> int:
    return ((n + m - 1) // m) * m


# --------------------------------- wrapper -------------------------------------
@functools.partial(jax.jit, static_argnames=("p", "training"))
def feature_dropout(x, key, *, p: float = 0.1, training: bool = True):
    """FeatureDropout.forward.  `key` is a jax.random key for the feature mask."""
    if (not training) or p == 0.0:
        return x                                            # identity, no kernel
    keep_prob = 1.0 - float(p)

    F = x.shape[-1]
    # One Bernoulli(keep_prob) mask over the feature axis, shared across all
    # leading (time / batch) dims — identical to the PyTorch (1,1,F)/(1,F) mask.
    u = jax.random.uniform(key, (F,), dtype=jnp.float32)
    mask = jnp.where(u < keep_prob, jnp.float32(1.0 / keep_prob), jnp.float32(0.0))

    # ---- wrapper-side layout plumbing: lane-dense (rows, L) slab, L % 128 == 0 ----
    L = _lane_dense_width(F)
    rep = L // F
    mask_wide = jnp.tile(mask, rep).reshape(1, L)           # (1, L) f32, lane-dense

    total = x.size
    n_pad_elems = (-total) % L
    flat = x.reshape(-1)
    if n_pad_elems:
        flat = jnp.concatenate([flat, jnp.zeros((n_pad_elems,), x.dtype)])
    rows = (total + n_pad_elems) // L
    slab = flat.reshape(rows, L)

    # ---- row tiling: big enough to hide DMA, small enough for every VMEM budget ----
    itemsize = jnp.dtype(x.dtype).itemsize
    tile_r = max(8, min(512, (2 * 1024 * 1024) // (L * itemsize)))  # ~<=2 MiB / tile
    tile_r = (tile_r // 8) * 8
    tile_r = min(tile_r, _round_up(rows, 8))                # don't over-pad tiny inputs
    n_pad_rows = (-rows) % tile_r
    if n_pad_rows:
        slab = jnp.concatenate([slab, jnp.zeros((n_pad_rows, L), x.dtype)], axis=0)
    rows_p = rows + n_pad_rows
    grid = (rows_p // tile_r,)

    out = pl.pallas_call(
        _feature_dropout_kernel,
        out_shape=jax.ShapeDtypeStruct((rows_p, L), x.dtype),
        grid=grid,
        in_specs=[
            pl.BlockSpec((1, L), lambda i: (0, 0)),         # mask: same block every step
            pl.BlockSpec((tile_r, L), lambda i: (i, 0)),    # x tile
        ],
        out_specs=pl.BlockSpec((tile_r, L), lambda i: (i, 0)),
        compiler_params=pltpu.CompilerParams(
            dimension_semantics=("parallel",)),              # both TCs on v7x
    )(mask_wide, slab)

    return out.reshape(-1)[:total].reshape(x.shape)


# ----------------------------------- main ---------------------------------------
if __name__ == "__main__":
    key = jax.random.PRNGKey(0)
    k_x, k_mask = jax.random.split(key)

    T, B, F = 8, 2, 32          # seq=8, batch=2, features=32 (3-D input path)
    p = 0.25
    keep_prob = 1.0 - p

    x = jax.random.normal(k_x, (T, B, F), dtype=jnp.float32)

    # Training-mode forward through the Pallas kernel.
    out = jax.block_until_ready(feature_dropout(x, k_mask, p=p, training=True))
    assert out.shape == x.shape

    # Property check (torch's RNG stream can't be reproduced bit-for-bit, but the
    # semantics must hold): every feature column is either entirely zeroed or
    # entirely scaled by exactly 1/keep_prob, consistently across all time steps
    # and batch elements.
    col_zero = jnp.all(jnp.abs(out) < 1e-6, axis=(0, 1))
    col_kept = jnp.all(jnp.abs(out - x / keep_prob) < 1e-4, axis=(0, 1))
    assert bool(jnp.all(col_zero | col_kept)), (col_zero, col_kept)

    # Eval mode and p == 0 are exact identities (no kernel launch).
    out_eval = jax.block_until_ready(feature_dropout(x, k_mask, p=p, training=False))
    assert bool(jnp.all(out_eval == x))
    out_p0 = jax.block_until_ready(feature_dropout(x, k_mask, p=0.0, training=True))
    assert bool(jnp.all(out_p0 == x))

    # 2-D input path (mask shape (1, F)) also works with the same kernel.
    x2d = jax.random.normal(k_x, (B, F), dtype=jnp.float32)
    out2d = jax.block_until_ready(feature_dropout(x2d, k_mask, p=p, training=True))
    col_zero2 = jnp.all(jnp.abs(out2d) < 1e-6, axis=0)
    col_kept2 = jnp.all(jnp.abs(out2d - x2d / keep_prob) < 1e-4, axis=0)
    assert bool(jnp.all(col_zero2 | col_kept2))

    print("KERNEL_OK")
</pallas_src>

<mosaic_0001>
module attributes {stable_mosaic.version = 11 : i64} {
  func.func @_feature_dropout_kernel(%arg0: i32, %arg1: memref<1x128xf32, #tpu.memory_space<vmem>>, %arg2: memref<8x128xf32, #tpu.memory_space<vmem>>, %arg3: memref<8x128xf32, #tpu.memory_space<vmem>>) attributes {dimension_semantics = [#tpu.dimension_semantics<parallel>], iteration_bounds = array<i64: 1>, scalar_prefetch = 0 : i64, scratch_operands = 0 : i64, tpu.core_type = #tpu.core_type<tc>, window_params = [{pipeline_mode = #tpu.pipeline_mode<synchronous>, transform_indices = @transform_0, window_bounds = array<i64: 1, 128>}, {transform_indices = @transform_1, window_bounds = array<i64: 8, 128>}, {transform_indices = @transform_2, window_bounds = array<i64: 8, 128>}]} {
    %c0 = arith.constant 0 : index
    %c0_0 = arith.constant 0 : index
    %0 = vector.load %arg2[%c0, %c0_0] : memref<8x128xf32, #tpu.memory_space<vmem>>, vector<8x128xf32>
    %c0_1 = arith.constant 0 : index
    %c0_2 = arith.constant 0 : index
    %1 = vector.load %arg1[%c0_1, %c0_2] : memref<1x128xf32, #tpu.memory_space<vmem>>, vector<1x128xf32>
    %2 = vector.broadcast %1 : vector<1x128xf32> to vector<8x128xf32>
    %3 = arith.mulf %0, %2 : vector<8x128xf32>
    %c0_3 = arith.constant 0 : index
    %c0_4 = arith.constant 0 : index
    %4 = vector.load %arg3[%c0_3, %c0_4] : memref<8x128xf32, #tpu.memory_space<vmem>>, vector<8x128xf32>
    tpu.vector_store %arg3[%c0_3, %c0_4], %3 {strides = array<i32>} : memref<8x128xf32, #tpu.memory_space<vmem>>, vector<8x128xf32>,
    return
  }
  func.func @transform_0(%arg0: i32) -> (i32, i32) {
    %c0_i32 = arith.constant 0 : i32
    %c0_i32_0 = arith.constant 0 : i32
    %c0_i32_1 = arith.constant 0 : i32
    return %c0_i32, %c0_i32_0 : i32, i32
  }
  func.func @transform_1(%arg0: i32) -> (i32, i32) {
    %c0_i32 = arith.constant 0 : i32
    %c0_i32_0 = arith.constant 0 : i32
    return %arg0, %c0_i32 : i32, i32
  }
  func.func @transform_2(%arg0: i32) -> (i32, i32) {
    %c0_i32 = arith.constant 0 : i32
    %c0_i32_0 = arith.constant 0 : i32
    return %arg0, %c0_i32 : i32, i32
  }
}

</mosaic_0001>

<llo_original>
// kernel: tile.9
$region0: #{tile.9}
  %s0 = inlined_call_operand.vmem [shape: f32[4,32], index: 0, kind: input, shape index: {}]
  %s1 = inlined_call_operand.vmem [shape: f32[1,128], index: 1, kind: output, shape index: {}]
  $region1: #{tile.9} parent=0
    #allocation0 [shape = 'u8[4096]{0}', space=vmem, size = 0x1000, scoped, tag = 'scoped mem for output reshape']
    #allocation1 [shape = 'u8[4096]{0}', space=vmem, size = 0x1000, scoped, tag = 'scoped mem for input reshape']
    %s3 = sshllo.u32 0, 4
    %v4 = vld [vmem:[%s0] sm:%s3]
    %5 = vst [vmem:[#allocation1] sm:%s3] %v4
    %v6 = vld [vmem:[#allocation1] sm:$0x1]
    %vm7 = vcmask 261120
    %8 = vst.msk [vmem:[#allocation0] sm:$0x1] %vm7, %v6
    %s9 = scalar_lea.vmem [#allocation1], 3
    %v10 = vld [vmem:[%s9] sm:$0x1]
    %11 = vrot.lane.b32.xlu0 %v10, 96
    %v12 = vpop.permute.xlu0 %11
    %vm13 = vcmask 1048320
    %14 = vst.msk [vmem:[#allocation0] sm:$0x1] %vm13, %v12
    %s15 = scalar_lea.vmem [#allocation1], 2
    %v16 = vld [vmem:[%s15] sm:$0x1]
    %17 = vrot.lane.b32.xlu0 %v16, 64
    %v18 = vpop.permute.xlu0 %17
    %vm19 = vcmask 785920
    %20 = vst.msk [vmem:[#allocation0] sm:$0x1] %vm19, %v18
    %s21 = scalar_lea.vmem [#allocation1], 1
    %v22 = vld [vmem:[%s21] sm:$0x1]
    %23 = vrot.lane.b32.xlu0 %v22, 32
    %v24 = vpop.permute.xlu0 %23
    %vm25 = vcmask 523520
    %26 = vst.msk [vmem:[#allocation0] sm:$0x1] %vm25, %v24
    %s28 = sshllo.u32 0, 1
    %v30 = vld [vmem:[#allocation0] sm:%s28]
    %s31 = sshllo.u32 0, 1
    %32 = vst [vmem:[%s1] sm:%s31] %v30

// kernel: tile.8
$region0: #{tile.8}
  #allocation0 [shape = 's32[1]{0}', space=sflag, size = 0x4, scoped, tag = 'scoped memory for tile.8']
  %s0 = inlined_call_operand.vmem [shape: f32[32], index: 0, kind: input, shape index: {}]
  %s1 = inlined_call_operand.vmem [shape: f32[4,32], index: 1, kind: output, shape index: {}]
  // Predicated region
  $region2: #{tile.8} parent=0 // pred_check
    _
  $region3: #{tile.8} parent=0 // pred_check_branch
    %3 = sbr.rel (0) target = $region5
  $region4: #{tile.8} parent=0 // pred_region
    _
  $region5: #{tile.8} parent=0 // pred_fallthru
    _
  %v4 = vld [vmem:[%s0] ss:$0 sm:$0xff]
  %5 = vst [vmem:[%s1] sm:$0xf] %v4

// kernel: feature_dropout.1
$region0: #{feature_dropout.1}
  #allocation0 [shape = 'u32[]', space=smem, size = 0x4, offset = 0x4, fixed_abs, tag = 'smem constant byte address 0x4 - core index']
  #allocation1 [shape = 'u32[144,128]{1,0:T(1,128)}', space=vmem, size = 0x12000, scoped, tag = 'internal scratch']
  %s0 = inlined_call_operand.vmem [shape: f32[1,128], index: 0, kind: input, shape index: {}]
  %s1 = inlined_call_operand.vmem [shape: f32[8,128], index: 1, kind: input, shape index: {}]
  %s2 = inlined_call_operand.vmem [shape: f32[8,128], index: 2, kind: output, shape index: {}]
  %s3 = sld [smem:[#allocation0]]
  $region18: #{feature_dropout.1} parent=0
    _
  %s5 = ssub.s32 1, %s3
  %s6 = scalar_select 0, %s5, %s3
  // Predicated region
  $region2: #{feature_dropout.1} parent=0 // pred_check
    _
  $region3: #{feature_dropout.1} parent=0 // pred_check_branch
    %8 = sbr.rel (0) target = $region5
  $region4: #{feature_dropout.1} parent=0 // pred_region
    _
  $region5: #{feature_dropout.1} parent=0 // pred_fallthru
    _
  // Predicated region
  $region6: #{feature_dropout.1} parent=0 // pred_check
    _
  $region7: #{feature_dropout.1} parent=0 // pred_check_branch
    %10 = sbr.rel (0) target = $region9
  $region8: #{feature_dropout.1} parent=0 // pred_region
    _
  $region9: #{feature_dropout.1} parent=0 // pred_fallthru
    _
  %v11 = vld [vmem:[%s1] sm:$0xff]
  %v12 = vld [vmem:[%s0] sm:$0x1]
  %v14 = vlaneseq
  %v15 = vshrl.u32 %v14, 7
  %v16 = vsub.s32 0, %v15
  %v17 = vrot.slane %v12, %v16
  %v19 = vmul.f32 %v11, %v17
  %20 = vst [vmem:[%s2] sm:$0xff] %v19
  // Predicated region
  $region10: #{feature_dropout.1} parent=0 // pred_check
    _
  $region11: #{feature_dropout.1} parent=0 // pred_check_branch
    %22 = sbr.rel (0) target = $region13
  $region12: #{feature_dropout.1} parent=0 // pred_region
    _
  $region13: #{feature_dropout.1} parent=0 // pred_fallthru
    _
  // Predicated region
  $region14: #{feature_dropout.1} parent=0 // pred_check
    _
  $region15: #{feature_dropout.1} parent=0 // pred_check_branch
    %24 = sbr.rel (0) target = $region17
  $region16: #{feature_dropout.1} parent=0 // pred_region
    _
  $region17: #{feature_dropout.1} parent=0 // pred_fallthru
    _

</llo_original>
